<compile_context>
chip_gen: v7x
topology: tpu7x:2x2x1
jax: 0.10.0
libtpu: 0.0.40
codegen_flags: <defaults>
</compile_context>

<pallas_src>
import math

import jax
import jax.numpy as jnp
from jax.experimental import pallas as pl
from jax.experimental.pallas import tpu as pltpu


def _round_up(x, m):
    return ((x + m - 1) // m) * m


_INV_SQRT2 = 1.0 / math.sqrt(2.0)


def _gelu_exact_f32(h):
    # exact (erf-based) GELU, matching torch.nn.GELU(approximate='none')
    return 0.5 * h * (1.0 + jax.lax.erf(h * jnp.float32(_INV_SQRT2)))


# ---------------------------------------------------------------------------
# Path A: whole weights resident in VMEM, grid only over row tiles.
# ---------------------------------------------------------------------------
def _mlp_kernel_resident(x_ref, wfc_ref, bfc_ref, wproj_ref, bproj_ref, o_ref):
    x = x_ref[...]
    h = jnp.dot(x, wfc_ref[...], preferred_element_type=jnp.float32)
    h = h + bfc_ref[...].astype(jnp.float32)
    h = _gelu_exact_f32(h)
    o = jnp.dot(h.astype(wproj_ref.dtype), wproj_ref[...],
                preferred_element_type=jnp.float32)
    o = o + bproj_ref[...].astype(jnp.float32)
    o_ref[...] = o.astype(o_ref.dtype)


# ---------------------------------------------------------------------------
# Path B: hidden dim tiled (large models / tight VMEM), f32 accumulator scratch.
# grid = (row tiles, hidden tiles); hidden axis is the reduction ("arbitrary").
# b_proj is folded into the accumulator init (no zeros-fill, no epilogue add).
# ---------------------------------------------------------------------------
def _mlp_kernel_htiled(x_ref, wfc_ref, bfc_ref, wproj_ref, bproj_ref, o_ref,
                       acc_ref):
    h_idx = pl.program_id(1)

    @pl.when(h_idx == 0)
    def _():
        acc_ref[...] = jnp.broadcast_to(
            bproj_ref[...].astype(jnp.float32), acc_ref.shape)

    x = x_ref[...]
    h = jnp.dot(x, wfc_ref[...], preferred_element_type=jnp.float32)
    h = h + bfc_ref[...].astype(jnp.float32)
    h = _gelu_exact_f32(h)
    acc_ref[...] += jnp.dot(h.astype(wproj_ref.dtype), wproj_ref[...],
                            preferred_element_type=jnp.float32)

    @pl.when(h_idx == pl.num_programs(1) - 1)
    def _():
        o_ref[...] = acc_ref[...].astype(o_ref.dtype)


# ---------------------------------------------------------------------------
# Hardware query (generation-aware VMEM budget)
# ---------------------------------------------------------------------------
def _hw_params():
    kind = ""
    try:
        kind = (jax.devices()[0].device_kind or "").lower()
    except Exception:
        pass
    vmem_cap = None
    try:
        info = pltpu.get_tpu_info()
        cap = getattr(info, "vmem_capacity_bytes", None)
        if cap:
            vmem_cap = int(cap)
    except Exception:
        vmem_cap = None
    if vmem_cap is None:
        vmem_cap = (64 << 20) if "v7" in kind else (128 << 20)
    small_vmem = vmem_cap <= (80 << 20)          # v7x: 64 MiB per TensorCore
    if small_vmem:
        budget = min(vmem_cap - (12 << 20), 52 << 20)
    else:
        budget = min(vmem_cap - (20 << 20), 108 << 20)
    return kind, vmem_cap, small_vmem, budget


# ---------------------------------------------------------------------------
# VMEM sizing helpers
# ---------------------------------------------------------------------------
def _est_resident(tm, E, H, wb, xb, ob, bb, single_buffer_weights=True):
    wcopies = 1 if single_buffer_weights else 2
    est = 2 * tm * E * xb                 # x tile (double-buffered)
    est += 2 * tm * E * ob                # out tile (double-buffered)
    est += wcopies * (E * H + H * E) * wb  # resident weights
    est += wcopies * (H + E) * bb          # biases
    est += tm * H * 4                      # f32 GELU intermediate
    est += tm * H * wb                     # compute-dtype copy for 2nd matmul
    est += tm * E * 4                      # f32 result before cast
    return est


def _est_htiled(tm, E, th, wb, xb, ob, bb):
    est = 2 * tm * E * xb
    est += 2 * tm * E * ob
    est += 2 * (E * th + th * E) * wb      # streamed weight slabs (double-buffered)
    est += 2 * (th + E) * bb
    est += tm * th * 4                     # f32 GELU intermediate
    est += tm * th * wb                    # compute-dtype copy
    est += tm * E * 4                      # f32 accumulator scratch
    return est


def _plan(M, E, H, wb, xb, ob, bb, budget, kind, small_vmem, row_align,
          tm_user, th_user):
    """Returns (use_htiled, tm, th)."""
    m_cap = _round_up(max(M, 1), row_align)

    def clamp_tm(t):
        t = max(row_align, min(int(t), m_cap))
        return _round_up(t, row_align)

    # ---- Path A: resident weights (preferred whenever it fits) ----
    if th_user is None:
        tm_a_cands = [tm_user] if tm_user is not None else [512, 384, 256, 128]
        for t in tm_a_cands:
            t = clamp_tm(t)
            if _est_resident(t, E, H, wb, xb, ob, bb) <= budget:
                return False, t, None

    # ---- Path B: hidden-dim streaming ----
    if tm_user is not None:
        tm_cands = [tm_user]
    elif small_vmem or "v7" in kind:
        tm_cands = [512, 384, 256, 128]        # v7x crossover ~310 FLOP/byte
    elif "v6" in kind:
        tm_cands = [768, 512, 384, 256, 128]   # v6e crossover ~650 FLOP/byte
    else:
        tm_cands = [512, 384, 256, 128]        # v5e crossover ~240 FLOP/byte

    min_th = 128 if ("v5" in kind and not small_vmem) else 256
    th_full = [c for c in (2048, 1024, 768, 512, 384, 256, 128)
               if c <= H and H % c == 0 and c % 128 == 0]
    if th_user is not None:
        th_cands = [th_user]
    else:
        th_cands = [c for c in th_full if c >= min_th] or th_full or [H]

    for t in tm_cands:
        t = clamp_tm(t)
        for c in th_cands:
            if _est_htiled(t, E, c, wb, xb, ob, bb) <= budget:
                return True, t, c
    # Nothing fits the budget: smallest tm + smallest th; vmem_limit will be
    # raised toward the physical cap by the caller.
    return True, clamp_tm(tm_cands[-1]), th_cands[-1]


# ---------------------------------------------------------------------------
# Wrapper
# ---------------------------------------------------------------------------
def mlp_pallas(x, w_fc, b_fc, w_proj, b_proj, *, tm=None, th=None,
               compute_dtype=None, vmem_budget_bytes=None):
    """Fused GPT-2 MLP: gelu(x @ w_fc + b_fc) @ w_proj + b_proj.

    x:      (B, T, E)
    w_fc:   (E, 4E)   b_fc:   (4E,)
    w_proj: (4E, E)   b_proj: (E,)

    Default keeps the input dtype exactly (matches torch f32 numerics).
    For large shapes prefer compute_dtype=jnp.bfloat16 (f32 accumulation is
    kept via preferred_element_type; halves weight DMA, ~2-3x MXU rate).
    """
    B, T, E = x.shape
    H = w_fc.shape[1]
    assert w_fc.shape == (E, H) and w_proj.shape == (H, E)
    assert b_fc.shape == (H,) and b_proj.shape == (E,)
    M = B * T

    out_dtype = x.dtype
    if compute_dtype is not None:
        x = x.astype(compute_dtype)
        w_fc = w_fc.astype(compute_dtype)
        w_proj = w_proj.astype(compute_dtype)
    xb = jnp.dtype(x.dtype).itemsize
    wb = jnp.dtype(w_fc.dtype).itemsize
    bb = jnp.dtype(b_fc.dtype).itemsize
    ob = jnp.dtype(out_dtype).itemsize

    # bf16 packs two rows per 32-bit sublane (fp8/int8 pack four): keep row
    # tiles aligned to the packing factor to avoid masked sublane handling.
    row_align = 32 if xb == 1 else (16 if xb == 2 else 8)

    kind, vmem_cap, small_vmem, auto_budget = _hw_params()
    budget = auto_budget if vmem_budget_bytes is None else int(vmem_budget_bytes)
    budget = min(budget, vmem_cap)

    use_htiled, tm, th = _plan(M, E, H, wb, xb, ob, bb, budget, kind,
                               small_vmem, row_align, tm, th)
    if use_htiled:
        assert H % th == 0, "hidden tile th must divide 4*embed_size"

    Mp = _round_up(M, tm)
    x2 = x.reshape(M, E)
    if Mp != M:
        x2 = jnp.pad(x2, ((0, Mp - M), (0, 0)))
    b_fc2 = b_fc.reshape(1, H)
    b_proj2 = b_proj.reshape(1, E)

    if use_htiled:
        est = _est_htiled(tm, E, th, wb, xb, ob, bb)
    else:
        est = _est_resident(tm, E, H, wb, xb, ob, bb)
    vmem_limit = int(min(max(int(est * 1.2) + (2 << 20), 32 << 20), vmem_cap))

    # Advisory cost estimate for the XLA scheduler.
    flops = 4 * Mp * E * H                    # two matmuls, 2*M*E*H each
    transcendentals = Mp * H                  # one erf per hidden element
    if use_htiled:
        weight_bytes = (E * H + H * E) * wb * max(Mp // tm, 1)
    else:
        weight_bytes = (E * H + H * E) * wb
    cost = pl.CostEstimate(
        flops=flops,
        transcendentals=transcendentals,
        bytes_accessed=Mp * E * (xb + ob) + weight_bytes + (H + E) * bb,
    )

    if not use_htiled:
        def call_resident(single_buffer_weights):
            # Constant-index blocks: single-buffer to halve resident footprint.
            const_kw = ({"pipeline_mode": pl.Buffered(1)}
                        if single_buffer_weights else {})
            return pl.pallas_call(
                _mlp_kernel_resident,
                out_shape=jax.ShapeDtypeStruct((Mp, E), out_dtype),
                grid_spec=pltpu.PrefetchScalarGridSpec(
                    num_scalar_prefetch=0,
                    grid=(Mp // tm,),
                    in_specs=[
                        pl.BlockSpec((tm, E), lambda i: (i, 0)),            # x tile
                        pl.BlockSpec((E, H), lambda i: (0, 0), **const_kw),  # W_fc
                        pl.BlockSpec((1, H), lambda i: (0, 0), **const_kw),  # b_fc
                        pl.BlockSpec((H, E), lambda i: (0, 0), **const_kw),  # W_proj
                        pl.BlockSpec((1, E), lambda i: (0, 0), **const_kw),  # b_proj
                    ],
                    out_specs=pl.BlockSpec((tm, E), lambda i: (i, 0)),
                ),
                compiler_params=pltpu.CompilerParams(
                    dimension_semantics=("parallel",),
                    vmem_limit_bytes=vmem_limit,
                ),
                cost_estimate=cost,
            )(x2, w_fc, b_fc2, w_proj, b_proj2)

        try:
            out = jax.block_until_ready(call_resident(True))
        except Exception:
            # Older runtimes may reject Buffered(1); retry with default buffering.
            out = call_resident(False)
    else:
        out = pl.pallas_call(
            _mlp_kernel_htiled,
            out_shape=jax.ShapeDtypeStruct((Mp, E), out_dtype),
            grid_spec=pltpu.PrefetchScalarGridSpec(
                num_scalar_prefetch=0,
                grid=(Mp // tm, H // th),
                in_specs=[
                    pl.BlockSpec((tm, E), lambda i, h: (i, 0)),   # x row tile
                    pl.BlockSpec((E, th), lambda i, h: (0, h)),   # W_fc hidden slab
                    pl.BlockSpec((1, th), lambda i, h: (0, h)),   # b_fc chunk
                    pl.BlockSpec((th, E), lambda i, h: (h, 0)),   # W_proj hidden slab
                    pl.BlockSpec((1, E), lambda i, h: (0, 0)),    # b_proj
                ],
                out_specs=pl.BlockSpec((tm, E), lambda i, h: (i, 0)),
                scratch_shapes=[pltpu.VMEM((tm, E), jnp.float32)],
            ),
            compiler_params=pltpu.CompilerParams(
                dimension_semantics=("parallel", "arbitrary"),
                vmem_limit_bytes=vmem_limit,
            ),
            cost_estimate=cost,
        )(x2, w_fc, b_fc2, w_proj, b_proj2)

    if Mp != M:
        out = out[:M]
    return out.reshape(B, T, E)


# ---------------------------------------------------------------------------
# Reference / init (torch.nn.Linear default init, weights stored (in, out))
# ---------------------------------------------------------------------------
def init_linear(key, fan_in, fan_out):
    kw, kb = jax.random.split(key)
    bound = 1.0 / math.sqrt(fan_in)
    w = jax.random.uniform(kw, (fan_in, fan_out), jnp.float32, -bound, bound)
    b = jax.random.uniform(kb, (fan_out,), jnp.float32, -bound, bound)
    return w, b


def mlp_reference(x, w_fc, b_fc, w_proj, b_proj):
    h = x @ w_fc + b_fc
    h = 0.5 * h * (1.0 + jax.lax.erf(h / jnp.sqrt(2.0)))
    return h @ w_proj + b_proj


def mlp_reference_bf16(x, w_fc, b_fc, w_proj, b_proj):
    # Emulates bf16 operands with f32 accumulation (what the kernel does with
    # compute_dtype=bf16), so the tolerance can be kept tight.
    xb = x.astype(jnp.bfloat16)
    wf = w_fc.astype(jnp.bfloat16)
    wp = w_proj.astype(jnp.bfloat16)
    h = jnp.dot(xb, wf, preferred_element_type=jnp.float32) + b_fc
    h = 0.5 * h * (1.0 + jax.lax.erf(h / jnp.sqrt(2.0)))
    return jnp.dot(h.astype(jnp.bfloat16), wp,
                   preferred_element_type=jnp.float32) + b_proj


if __name__ == "__main__":
    key = jax.random.PRNGKey(0)
    k1, k2, k3, k4, k5, k6 = jax.random.split(key, 6)

    # --- Test 1: toy GPT-2-like config (embed_size=32), f32, resident path ---
    B, T, E = 2, 8, 32
    H = 4 * E
    x = jax.random.normal(k1, (B, T, E), jnp.float32)
    w_fc, b_fc = init_linear(k2, E, H)
    w_proj, b_proj = init_linear(k3, H, E)

    out = jax.block_until_ready(mlp_pallas(x, w_fc, b_fc, w_proj, b_proj))
    ref = mlp_reference(x, w_fc, b_fc, w_proj, b_proj)
    assert out.shape == (B, T, E)
    assert jnp.allclose(out, ref, atol=1e-5, rtol=1e-5)

    # --- Test 2: lane-dense config (E=128, H=512), forced H-tiled reduction path ---
    B2, T2, E2 = 2, 8, 128
    H2 = 4 * E2
    x2 = jax.random.normal(k4, (B2, T2, E2), jnp.float32)
    w_fc2, b_fc2 = init_linear(k5, E2, H2)
    w_proj2, b_proj2 = init_linear(k6, H2, E2)

    out2 = jax.block_until_ready(
        mlp_pallas(x2, w_fc2, b_fc2, w_proj2, b_proj2, th=256))
    ref2 = mlp_reference(x2, w_fc2, b_fc2, w_proj2, b_proj2)
    assert out2.shape == (B2, T2, E2)
    assert jnp.allclose(out2, ref2, atol=1e-4, rtol=1e-4)

    # --- Test 3: bf16 operands / f32 accumulation, compared to bf16 reference ---
    out3 = jax.block_until_ready(
        mlp_pallas(x2, w_fc2, b_fc2, w_proj2, b_proj2,
                   compute_dtype=jnp.bfloat16))
    ref3 = mlp_reference_bf16(x2, w_fc2, b_fc2, w_proj2, b_proj2)
    assert out3.dtype == jnp.float32
    assert jnp.allclose(out3, ref3, atol=1e-2, rtol=1e-2)

    print("KERNEL_OK")
</pallas_src>

<mosaic_0001>
module attributes {stable_mosaic.version = 11 : i64} {
  func.func @_mlp_kernel_resident(%arg0: i32, %arg1: memref<16x32xf32, #tpu.memory_space<vmem>>, %arg2: memref<32x128xf32, #tpu.memory_space<vmem>>, %arg3: memref<1x128xf32, #tpu.memory_space<vmem>>, %arg4: memref<128x32xf32, #tpu.memory_space<vmem>>, %arg5: memref<1x32xf32, #tpu.memory_space<vmem>>, %arg6: memref<16x32xf32, #tpu.memory_space<vmem>>) attributes {dimension_semantics = [#tpu.dimension_semantics<parallel>], iteration_bounds = array<i64: 1>, scalar_prefetch = 0 : i64, scratch_operands = 0 : i64, tpu.core_type = #tpu.core_type<tc>, window_params = [{transform_indices = @transform_0, window_bounds = array<i64: 16, 32>}, {pipeline_mode = #tpu.pipeline_mode<synchronous>, transform_indices = @transform_1, window_bounds = array<i64: 32, 128>}, {pipeline_mode = #tpu.pipeline_mode<synchronous>, transform_indices = @transform_2, window_bounds = array<i64: 1, 128>}, {pipeline_mode = #tpu.pipeline_mode<synchronous>, transform_indices = @transform_3, window_bounds = array<i64: 128, 32>}, {pipeline_mode = #tpu.pipeline_mode<synchronous>, transform_indices = @transform_4, window_bounds = array<i64: 1, 32>}, {transform_indices = @transform_5, window_bounds = array<i64: 16, 32>}]} {
    %c0 = arith.constant 0 : index
    %c0_0 = arith.constant 0 : index
    %0 = vector.load %arg1[%c0, %c0_0] : memref<16x32xf32, #tpu.memory_space<vmem>>, vector<16x32xf32>
    %c0_1 = arith.constant 0 : index
    %c0_2 = arith.constant 0 : index
    %1 = vector.load %arg2[%c0_1, %c0_2] : memref<32x128xf32, #tpu.memory_space<vmem>>, vector<32x128xf32>
    %cst = arith.constant dense<0.000000e+00> : vector<16x128xf32>
    %2 = tpu.matmul %0, %1, %cst {dimension_numbers = #tpu.dot_dimension_numbers<[1], [0], [0], [1], [0, 0, 1, 1], [], []>} : vector<16x32xf32>, vector<32x128xf32>, vector<16x128xf32> -> vector<16x128xf32>
    %c0_3 = arith.constant 0 : index
    %c0_4 = arith.constant 0 : index
    %3 = vector.load %arg3[%c0_3, %c0_4] : memref<1x128xf32, #tpu.memory_space<vmem>>, vector<1x128xf32>
    %4 = vector.broadcast %3 : vector<1x128xf32> to vector<16x128xf32>
    %5 = arith.addf %2, %4 : vector<16x128xf32>
    %cst_5 = arith.constant 5.000000e-01 : f32
    %6 = vector.broadcast %cst_5 : f32 to vector<16x128xf32>
    %7 = arith.mulf %6, %5 : vector<16x128xf32>
    %cst_6 = arith.constant 0.707106769 : f32
    %8 = vector.broadcast %cst_6 : f32 to vector<16x128xf32>
    %9 = arith.mulf %5, %8 : vector<16x128xf32>
    %10 = math.erf %9 : vector<16x128xf32>
    %cst_7 = arith.constant 1.000000e+00 : f32
    %11 = vector.broadcast %cst_7 : f32 to vector<16x128xf32>
    %12 = arith.addf %11, %10 : vector<16x128xf32>
    %13 = arith.mulf %7, %12 : vector<16x128xf32>
    %c0_8 = arith.constant 0 : index
    %c0_9 = arith.constant 0 : index
    %14 = vector.load %arg4[%c0_8, %c0_9] : memref<128x32xf32, #tpu.memory_space<vmem>>, vector<128x32xf32>
    %cst_10 = arith.constant dense<0.000000e+00> : vector<16x32xf32>
    %15 = tpu.matmul %13, %14, %cst_10 {dimension_numbers = #tpu.dot_dimension_numbers<[1], [0], [0], [1], [0, 0, 1, 1], [], []>} : vector<16x128xf32>, vector<128x32xf32>, vector<16x32xf32> -> vector<16x32xf32>
    %c0_11 = arith.constant 0 : index
    %c0_12 = arith.constant 0 : index
    %16 = vector.load %arg5[%c0_11, %c0_12] : memref<1x32xf32, #tpu.memory_space<vmem>>, vector<1x32xf32>
    %17 = vector.broadcast %16 : vector<1x32xf32> to vector<16x32xf32>
    %18 = arith.addf %15, %17 : vector<16x32xf32>
    %c0_13 = arith.constant 0 : index
    %c0_14 = arith.constant 0 : index
    %19 = vector.load %arg6[%c0_13, %c0_14] : memref<16x32xf32, #tpu.memory_space<vmem>>, vector<16x32xf32>
    tpu.vector_store %arg6[%c0_13, %c0_14], %18 {strides = array<i32>} : memref<16x32xf32, #tpu.memory_space<vmem>>, vector<16x32xf32>,
    return
  }
  func.func @transform_0(%arg0: i32) -> (i32, i32) {
    %c0_i32 = arith.constant 0 : i32
    %c0_i32_0 = arith.constant 0 : i32
    return %arg0, %c0_i32 : i32, i32
  }
  func.func @transform_1(%arg0: i32) -> (i32, i32) {
    %c0_i32 = arith.constant 0 : i32
    %c0_i32_0 = arith.constant 0 : i32
    %c0_i32_1 = arith.constant 0 : i32
    return %c0_i32, %c0_i32_0 : i32, i32
  }
  func.func @transform_2(%arg0: i32) -> (i32, i32) {
    %c0_i32 = arith.constant 0 : i32
    %c0_i32_0 = arith.constant 0 : i32
    %c0_i32_1 = arith.constant 0 : i32
    return %c0_i32, %c0_i32_0 : i32, i32
  }
  func.func @transform_3(%arg0: i32) -> (i32, i32) {
    %c0_i32 = arith.constant 0 : i32
    %c0_i32_0 = arith.constant 0 : i32
    %c0_i32_1 = arith.constant 0 : i32
    return %c0_i32, %c0_i32_0 : i32, i32
  }
  func.func @transform_4(%arg0: i32) -> (i32, i32) {
    %c0_i32 = arith.constant 0 : i32
    %c0_i32_0 = arith.constant 0 : i32
    %c0_i32_1 = arith.constant 0 : i32
    return %c0_i32, %c0_i32_0 : i32, i32
  }
  func.func @transform_5(%arg0: i32) -> (i32, i32) {
    %c0_i32 = arith.constant 0 : i32
    %c0_i32_0 = arith.constant 0 : i32
    return %arg0, %c0_i32 : i32, i32
  }
}

module attributes {stable_mosaic.version = 11 : i64} {
  func.func @_mlp_kernel_resident(%arg0: i32, %arg1: memref<16x32xf32, #tpu.memory_space<vmem>>, %arg2: memref<32x128xf32, #tpu.memory_space<vmem>>, %arg3: memref<1x128xf32, #tpu.memory_space<vmem>>, %arg4: memref<128x32xf32, #tpu.memory_space<vmem>>, %arg5: memref<1x32xf32, #tpu.memory_space<vmem>>, %arg6: memref<16x32xf32, #tpu.memory_space<vmem>>) attributes {dimension_semantics = [#tpu.dimension_semantics<parallel>], iteration_bounds = array<i64: 1>, scalar_prefetch = 0 : i64, scratch_operands = 0 : i64, tpu.core_type = #tpu.core_type<tc>, window_params = [{transform_indices = @transform_0, window_bounds = array<i64: 16, 32>}, {pipeline_mode = #tpu.pipeline_mode<synchronous>, transform_indices = @transform_1, window_bounds = array<i64: 32, 128>}, {pipeline_mode = #tpu.pipeline_mode<synchronous>, transform_indices = @transform_2, window_bounds = array<i64: 1, 128>}, {pipeline_mode = #tpu.pipeline_mode<synchronous>, transform_indices = @transform_3, window_bounds = array<i64: 128, 32>}, {pipeline_mode = #tpu.pipeline_mode<synchronous>, transform_indices = @transform_4, window_bounds = array<i64: 1, 32>}, {transform_indices = @transform_5, window_bounds = array<i64: 16, 32>}]} {
    %c0 = arith.constant 0 : index
    %c0_0 = arith.constant 0 : index
    %0 = vector.load %arg1[%c0, %c0_0] : memref<16x32xf32, #tpu.memory_space<vmem>>, vector<16x32xf32>
    %c0_1 = arith.constant 0 : index
    %c0_2 = arith.constant 0 : index
    %1 = vector.load %arg2[%c0_1, %c0_2] : memref<32x128xf32, #tpu.memory_space<vmem>>, vector<32x128xf32>
    %cst = arith.constant dense<0.000000e+00> : vector<16x128xf32>
    %2 = tpu.matmul %0, %1, %cst {dimension_numbers = #tpu.dot_dimension_numbers<[1], [0], [0], [1], [0, 0, 1, 1], [], []>} : vector<16x32xf32>, vector<32x128xf32>, vector<16x128xf32> -> vector<16x128xf32>
    %c0_3 = arith.constant 0 : index
    %c0_4 = arith.constant 0 : index
    %3 = vector.load %arg3[%c0_3, %c0_4] : memref<1x128xf32, #tpu.memory_space<vmem>>, vector<1x128xf32>
    %4 = vector.broadcast %3 : vector<1x128xf32> to vector<16x128xf32>
    %5 = arith.addf %2, %4 : vector<16x128xf32>
    %cst_5 = arith.constant 5.000000e-01 : f32
    %6 = vector.broadcast %cst_5 : f32 to vector<16x128xf32>
    %7 = arith.mulf %6, %5 : vector<16x128xf32>
    %cst_6 = arith.constant 0.707106769 : f32
    %8 = vector.broadcast %cst_6 : f32 to vector<16x128xf32>
    %9 = arith.mulf %5, %8 : vector<16x128xf32>
    %10 = math.erf %9 : vector<16x128xf32>
    %cst_7 = arith.constant 1.000000e+00 : f32
    %11 = vector.broadcast %cst_7 : f32 to vector<16x128xf32>
    %12 = arith.addf %11, %10 : vector<16x128xf32>
    %13 = arith.mulf %7, %12 : vector<16x128xf32>
    %c0_8 = arith.constant 0 : index
    %c0_9 = arith.constant 0 : index
    %14 = vector.load %arg4[%c0_8, %c0_9] : memref<128x32xf32, #tpu.memory_space<vmem>>, vector<128x32xf32>
    %cst_10 = arith.constant dense<0.000000e+00> : vector<16x32xf32>
    %15 = tpu.matmul %13, %14, %cst_10 {dimension_numbers = #tpu.dot_dimension_numbers<[1], [0], [0], [1], [0, 0, 1, 1], [], []>} : vector<16x128xf32>, vector<128x32xf32>, vector<16x32xf32> -> vector<16x32xf32>
    %c0_11 = arith.constant 0 : index
    %c0_12 = arith.constant 0 : index
    %16 = vector.load %arg5[%c0_11, %c0_12] : memref<1x32xf32, #tpu.memory_space<vmem>>, vector<1x32xf32>
    %17 = vector.broadcast %16 : vector<1x32xf32> to vector<16x32xf32>
    %18 = arith.addf %15, %17 : vector<16x32xf32>
    %c0_13 = arith.constant 0 : index
    %c0_14 = arith.constant 0 : index
    %19 = vector.load %arg6[%c0_13, %c0_14] : memref<16x32xf32, #tpu.memory_space<vmem>>, vector<16x32xf32>
    tpu.vector_store %arg6[%c0_13, %c0_14], %18 {strides = array<i32>} : memref<16x32xf32, #tpu.memory_space<vmem>>, vector<16x32xf32>,
    return
  }
  func.func @transform_0(%arg0: i32) -> (i32, i32) {
    %c0_i32 = arith.constant 0 : i32
    %c0_i32_0 = arith.constant 0 : i32
    return %arg0, %c0_i32 : i32, i32
  }
  func.func @transform_1(%arg0: i32) -> (i32, i32) {
    %c0_i32 = arith.constant 0 : i32
    %c0_i32_0 = arith.constant 0 : i32
    %c0_i32_1 = arith.constant 0 : i32
    return %c0_i32, %c0_i32_0 : i32, i32
  }
  func.func @transform_2(%arg0: i32) -> (i32, i32) {
    %c0_i32 = arith.constant 0 : i32
    %c0_i32_0 = arith.constant 0 : i32
    %c0_i32_1 = arith.constant 0 : i32
    return %c0_i32, %c0_i32_0 : i32, i32
  }
  func.func @transform_3(%arg0: i32) -> (i32, i32) {
    %c0_i32 = arith.constant 0 : i32
    %c0_i32_0 = arith.constant 0 : i32
    %c0_i32_1 = arith.constant 0 : i32
    return %c0_i32, %c0_i32_0 : i32, i32
  }
  func.func @transform_4(%arg0: i32) -> (i32, i32) {
    %c0_i32 = arith.constant 0 : i32
    %c0_i32_0 = arith.constant 0 : i32
    %c0_i32_1 = arith.constant 0 : i32
    return %c0_i32, %c0_i32_0 : i32, i32
  }
  func.func @transform_5(%arg0: i32) -> (i32, i32) {
    %c0_i32 = arith.constant 0 : i32
    %c0_i32_0 = arith.constant 0 : i32
    return %arg0, %c0_i32 : i32, i32
  }
}

</mosaic_0001>

<llo_original>
// kernel: tpu_custom_call.1
$region0: #{tpu_custom_call.1}
  #allocation0 [shape = 'u32[]', space=smem, size = 0x4, offset = 0x4, fixed_abs, tag = 'smem constant byte address 0x4 - core index']
  #allocation1 [shape = 'u32[144,128]{1,0:T(1,128)}', space=vmem, size = 0x12000, scoped, tag = 'internal scratch']
  %s0 = inlined_call_operand.vmem [shape: f32[16,32], index: 0, kind: input, shape index: {}]
  %s1 = inlined_call_operand.vmem [shape: f32[32,128], index: 1, kind: input, shape index: {}]
  %s2 = inlined_call_operand.vmem [shape: f32[1,128], index: 2, kind: input, shape index: {}]
  %s3 = inlined_call_operand.vmem [shape: f32[128,32], index: 3, kind: input, shape index: {}]
  %s4 = inlined_call_operand.vmem [shape: f32[1,32], index: 4, kind: input, shape index: {}]
  %s5 = inlined_call_operand.hbm [shape: f32[16,32], index: 5, kind: output, shape index: {}]
  %s6 = sld [smem:[#allocation0]]
  $region30: #{tpu_custom_call.1} parent=0
    _
  %s8 = ssub.s32 1, %s6
  %s9 = scalar_select 0, %s8, %s6
  $region1: #{tpu_custom_call.1} parent=0
    #allocation2 [shape = 'u8[8192]{0}', space=vmem, size = 0x2000, scoped, tag = 'output window, operand 0, single buffered']
    #allocation3 [shape = 's32[1]{0}', space=sflag, size = 0x4, scoped, tag = 'scoped memory for tpu_custom_call.1']
    %10 = vsyncpa [#allocation3], 0
    // Predicated region
    $region2: #{tpu_custom_call.1} parent=1 // pred_check
      _
    $region3: #{tpu_custom_call.1} parent=1 // pred_check_branch
      %12 = sbr.rel (0) target = $region5
    $region4: #{tpu_custom_call.1} parent=1 // pred_region
      _
    $region5: #{tpu_custom_call.1} parent=1 // pred_fallthru
      _
    // Predicated region
    $region6: #{tpu_custom_call.1} parent=1 // pred_check
      _
    $region7: #{tpu_custom_call.1} parent=1 // pred_check_branch
      %14 = sbr.rel (0) target = $region9
    $region8: #{tpu_custom_call.1} parent=1 // pred_region
      _
    $region9: #{tpu_custom_call.1} parent=1 // pred_fallthru
      _
    // Predicated region
    $region10: #{tpu_custom_call.1} parent=1 // pred_check
      _
    $region11: #{tpu_custom_call.1} parent=1 // pred_check_branch
      %16 = sbr.rel (0) target = $region13
    $region12: #{tpu_custom_call.1} parent=1 // pred_region
      _
    $region13: #{tpu_custom_call.1} parent=1 // pred_fallthru
      _
    // Predicated region
    $region14: #{tpu_custom_call.1} parent=1 // pred_check
      _
    $region15: #{tpu_custom_call.1} parent=1 // pred_check_branch
      %18 = sbr.rel (0) target = $region17
    $region16: #{tpu_custom_call.1} parent=1 // pred_region
      _
    $region17: #{tpu_custom_call.1} parent=1 // pred_fallthru
      _
    // Predicated region
    $region18: #{tpu_custom_call.1} parent=1 // pred_check
      _
    $region19: #{tpu_custom_call.1} parent=1 // pred_check_branch
      %20 = sbr.rel (0) target = $region21
    $region20: #{tpu_custom_call.1} parent=1 // pred_region
      _
    $region21: #{tpu_custom_call.1} parent=1 // pred_fallthru
      _
    %v21 = vld [vmem:[%s0] sm:$0xff]
    %v22 = vld [vmem:[%s0 + $0x8] sm:$0xff]
    %v23 = vld [vmem:[%s1] sm:$0xff]
    %v24 = vld [vmem:[%s1 + $0x8] sm:$0xff]
    %v25 = vld [vmem:[%s1 + $0x10] sm:$0xff]
    %v26 = vld [vmem:[%s1 + $0x18] sm:$0xff]
    %v27 = vld [vmem:[%s2] sm:$0x1]
    %v29 = vlaneseq
    %v30 = vshrl.u32 %v29, 7
    %v31 = vsub.s32 0, %v30
    %v32 = vrot.slane %v27, %v31
    %vm34 = vcmask 261120
    %v36 = vsel %vm34, %v21, 0
    %v39 = vsel %vm34, %v22, 0
    %41 = vmatprep.subr.mxu0 0.0
    %42 = vmatpush1.msra.mxu0 %v23
    %43 = vmatprep.subr.mxu0 0.0
    %44 = vmatpush1.msra.mxu0 %v24
    %45 = vmatprep.subr.mxu0 0.0
    %46 = vmatpush1.msra.mxu0 %v25
    %47 = vmatprep.subr.mxu0 0.0
    %48 = vmatpush1.msra.mxu0 %v26
    %49 = vmatprep.subr.mxu0 0.0
    %50 = vmatpush1.msra.mxu0 0.0
    %51 = vmatprep.subr.mxu0 0.0
    %52 = vmatpush1.msra.mxu0 0.0
    %53 = vmatprep.subr.mxu0 0.0
    %54 = vmatpush1.msra.mxu0 0.0
    %55 = vmatprep.subr.mxu0 0.0
    %56 = vmatpush1.msra.mxu0 0.0
    %57 = vmatprep.subr.mxu0 0.0
    %58 = vmatpush1.msra.mxu0 0.0
    %59 = vmatprep.subr.mxu0 0.0
    %60 = vmatpush1.msra.mxu0 0.0
    %61 = vmatprep.subr.mxu0 0.0
    %62 = vmatpush1.msra.mxu0 0.0
    %63 = vmatprep.subr.mxu0 0.0
    %64 = vmatpush1.msra.mxu0 0.0
    %65 = vmatprep.subr.mxu0 0.0
    %66 = vmatpush1.msra.mxu0 0.0
    %67 = vmatprep.subr.mxu0 0.0
    %68 = vmatpush1.msra.mxu0 0.0
    %69 = vmatprep.subr.mxu0 0.0
    %70 = vmatpush1.msra.mxu0 0.0
    %71 = vmatprep.subr.mxu0 0.0
    %72 = vmatpush1.msra.mxu0 0.0
    %73 = vmatprep.subr.mxu0 0.0
    %74 = vmatpush1.msra.mxu0 0.0
    %75 = vmatprep.subr.mxu0 0.0
    %76 = vmatpush1.msra.mxu0 0.0
    %77 = vmatprep.subr.mxu0 0.0
    %78 = vmatpush1.msra.mxu0 0.0
    %79 = vmatprep.subr.mxu0 0.0
    %80 = vmatpush1.msra.mxu0 0.0
    %81 = vmatprep.subr.mxu0 0.0
    %82 = vmatpush1.msra.mxu0 0.0
    %83 = vmatprep.subr.mxu0 0.0
    %84 = vmatpush1.msra.mxu0 0.0
    %85 = vmatprep.subr.mxu0 0.0
    %86 = vmatpush1.msra.mxu0 0.0
    %87 = vmatprep.subr.mxu0 0.0
    %88 = vmatpush1.msra.mxu0 0.0
    %89 = vmatprep.subr.mxu0 0.0
    %90 = vmatpush1.msra.mxu0 0.0
    %91 = vmatprep.subr.mxu0 0.0
    %92 = vmatpush1.msra.mxu0 0.0
    %93 = vmatprep.subr.mxu0 0.0
    %94 = vmatpush1.msra.mxu0 0.0
    %95 = vmatprep.subr.mxu0 0.0
    %96 = vmatpush1.msra.mxu0 0.0
    %97 = vmatprep.subr.mxu0 0.0
    %98 = vmatpush1.msra.mxu0 0.0
    %99 = vmatprep.subr.mxu0 0.0
    %100 = vmatpush1.msra.mxu0 0.0
    %101 = vmatprep.subr.mxu0 0.0
    %102 = vmatpush1.msra.mxu0 0.0
    %103 = vmatprep.subr.mxu0 0.0
    %104 = vmatpush1.msra.mxu0 0.0
    %105 = vmatprep.mubr.f32.mxu0 0.0
    %106 = vmatmul.mubr.f32.gmra.mrb[0].mxu0 %v36
    %v107 = vpop.f32.mrb[0].mxu0
    %v108 = vadd.f32 %v32, %v107
    %v109 = vpop.f32.mrb[0].mxu0
    %110 = vmatprep.mubr.f32.mxu0 0.0
    %111 = vmatmul.mubr.f32.gmra.mrb[0].mxu0 %v39
    %v112 = vpop.f32.mrb[0].mxu0
    %v113 = vadd.f32 %v32, %v112
    %v114 = vpop.f32.mrb[0].mxu0
    %115 = vdwg.mxu0
    %v116 = vmul.f32 %v108, 0.5
    %v117 = vmul.f32 %v113, 0.5
    %v118 = vmul.f32 %v108, 0.70710677
    %v119 = vmul.f32 %v113, 0.70710677
    %v120 = verf.f32.pop %v118
    %v121 = verf.f32.pop %v119
    %v122 = vadd.f32 %v120, 1.0
    %v123 = vadd.f32 %v121, 1.0
    %v124 = vmul.f32 %v116, %v122
    %v125 = vmul.f32 %v117, %v123
    %v126 = vld [vmem:[%s3] sm:$0xff]
    %v127 = vld [vmem:[%s3 + $0x8] sm:$0xff]
    %v128 = vld [vmem:[%s3 + $0x10] sm:$0xff]
    %v129 = vld [vmem:[%s3 + $0x18] sm:$0xff]
    %v130 = vld [vmem:[%s3 + $0x20] sm:$0xff]
    %v131 = vld [vmem:[%s3 + $0x28] sm:$0xff]
    %v132 = vld [vmem:[%s3 + $0x30] sm:$0xff]
    %v133 = vld [vmem:[%s3 + $0x38] sm:$0xff]
    %v134 = vld [vmem:[%s3 + $0x40] sm:$0xff]
    %v135 = vld [vmem:[%s3 + $0x48] sm:$0xff]
    %v136 = vld [vmem:[%s3 + $0x50] sm:$0xff]
    %v137 = vld [vmem:[%s3 + $0x58] sm:$0xff]
    %v138 = vld [vmem:[%s3 + $0x60] sm:$0xff]
    %v139 = vld [vmem:[%s3 + $0x68] sm:$0xff]
    %v140 = vld [vmem:[%s3 + $0x70] sm:$0xff]
    %v141 = vld [vmem:[%s3 + $0x78] sm:$0xff]
    %v142 = vld [vmem:[%s4] sm:$0x1]
    %v144 = vlaneseq
    %v145 = vshrl.u32 %v144, 7
    %v146 = vsub.s32 0, %v145
    %v147 = vrot.slane %v142, %v146
    %149 = vmatprep.subr.mxu0 0.0
    %150 = vmatpush1.msra.mxu0 %v126
    %151 = vmatprep.subr.mxu0 0.0
    %152 = vmatpush1.msra.mxu0 %v127
    %153 = vmatprep.subr.mxu0 0.0
    %154 = vmatpush1.msra.mxu0 %v128
    %155 = vmatprep.subr.mxu0 0.0
    %156 = vmatpush1.msra.mxu0 %v129
    %157 = vmatprep.subr.mxu0 0.0
    %158 = vmatpush1.msra.mxu0 %v130
    %159 = vmatprep.subr.mxu0 0.0
    %160 = vmatpush1.msra.mxu0 %v131
    %161 = vmatprep.subr.mxu0 0.0
    %162 = vmatpush1.msra.mxu0 %v132
    %163 = vmatprep.subr.mxu0 0.0
    %164 = vmatpush1.msra.mxu0 %v133
    %165 = vmatprep.subr.mxu0 0.0
    %166 = vmatpush1.msra.mxu0 %v134
    %167 = vmatprep.subr.mxu0 0.0
    %168 = vmatpush1.msra.mxu0 %v135
    %169 = vmatprep.subr.mxu0 0.0
    %170 = vmatpush1.msra.mxu0 %v136
    %171 = vmatprep.subr.mxu0 0.0
    %172 = vmatpush1.msra.mxu0 %v137
    %173 = vmatprep.subr.mxu0 0.0
    %174 = vmatpush1.msra.mxu0 %v138
    %175 = vmatprep.subr.mxu0 0.0
    %176 = vmatpush1.msra.mxu0 %v139
    %177 = vmatprep.subr.mxu0 0.0
    %178 = vmatpush1.msra.mxu0 %v140
    %179 = vmatprep.subr.mxu0 0.0
    %180 = vmatpush1.msra.mxu0 %v141
    %181 = vmatprep.subr.mxu0 0.0
    %182 = vmatpush1.msra.mxu0 0.0
    %183 = vmatprep.subr.mxu0 0.0
    %184 = vmatpush1.msra.mxu0 0.0
    %185 = vmatprep.subr.mxu0 0.0
    %186 = vmatpush1.msra.mxu0 0.0
    %187 = vmatprep.subr.mxu0 0.0
    %188 = vmatpush1.msra.mxu0 0.0
    %189 = vmatprep.subr.mxu0 0.0
    %190 = vmatpush1.msra.mxu0 0.0
    %191 = vmatprep.subr.mxu0 0.0
    %192 = vmatpush1.msra.mxu0 0.0
    %193 = vmatprep.subr.mxu0 0.0
    %194 = vmatpush1.msra.mxu0 0.0
    %195 = vmatprep.subr.mxu0 0.0
    %196 = vmatpush1.msra.mxu0 0.0
    %197 = vmatprep.subr.mxu0 0.0
    %198 = vmatpush1.msra.mxu0 0.0
    %199 = vmatprep.subr.mxu0 0.0
    %200 = vmatpush1.msra.mxu0 0.0
    %201 = vmatprep.subr.mxu0 0.0
    %202 = vmatpush1.msra.mxu0 0.0
    %203 = vmatprep.subr.mxu0 0.0
    %204 = vmatpush1.msra.mxu0 0.0
    %205 = vmatprep.subr.mxu0 0.0
    %206 = vmatpush1.msra.mxu0 0.0
    %207 = vmatprep.subr.mxu0 0.0
    %208 = vmatpush1.msra.mxu0 0.0
    %209 = vmatprep.subr.mxu0 0.0
    %210 = vmatpush1.msra.mxu0 0.0
    %211 = vmatprep.subr.mxu0 0.0
    %212 = vmatpush1.msra.mxu0 0.0
    %213 = vmatprep.mubr.f32.mxu0 0.0
    %214 = vmatmul.mubr.f32.gmra.mrb[0].mxu0 %v124
    %v215 = vpop.f32.mrb[0].mxu0
    %v216 = vadd.f32 %v147, %v215
    %v217 = vpop.f32.mrb[0].mxu0
    %218 = vmatprep.mubr.f32.mxu0 0.0
    %219 = vmatmul.mubr.f32.gmra.mrb[0].mxu0 %v125
    %v220 = vpop.f32.mrb[0].mxu0
    %v221 = vadd.f32 %v147, %v220
    %v222 = vpop.f32.mrb[0].mxu0
    %223 = vdwg.mxu0
    %224 = vst.msk [vmem:[#allocation2] sm:$0xff] %vm34, %v216
    %225 = vst.msk [vmem:[#allocation2 + $0x8] sm:$0xff] %vm34, %v221
    // Predicated region
    $region22: #{tpu_custom_call.1} parent=1 // pred_check
      _
    $region23: #{tpu_custom_call.1} parent=1 // pred_check_branch
      %227 = sbr.rel (0) target = $region25
    $region24: #{tpu_custom_call.1} parent=1 // pred_region
      %s229 = ssub.s32 256, 256
      %230 = vsyncadd [#allocation3], %s229
      %s231 = sshll.u32 [#allocation2], 4
      %s232 = int_to_ptr.vmem [resolvable:$true] %s231
      %237 = dma.vmem_to_hbm [thread:$0]  %s232, 256, %s5, [#allocation3], 128, 128, 8
    $region25: #{tpu_custom_call.1} parent=1 // pred_fallthru
      _
    // Predicated region
    $region26: #{tpu_custom_call.1} parent=1 // pred_check
      _
    $region27: #{tpu_custom_call.1} parent=1 // pred_check_branch
      %239 = sbr.rel (0) target = $region29
    $region28: #{tpu_custom_call.1} parent=1 // pred_region
      %240 = dma.done [#allocation3], 256
    $region29: #{tpu_custom_call.1} parent=1 // pred_fallthru
      _
    %241 = vsyncpa [#allocation3], 1

// kernel: tpu_custom_call.1
$region0: #{tpu_custom_call.1}
  #allocation0 [shape = 'u32[]', space=smem, size = 0x4, offset = 0x4, fixed_abs, tag = 'smem constant byte address 0x4 - core index']
  #allocation1 [shape = 'u32[144,128]{1,0:T(1,128)}', space=vmem, size = 0x12000, scoped, tag = 'internal scratch']
  %s0 = inlined_call_operand.vmem [shape: f32[16,32], index: 0, kind: input, shape index: {}]
  %s1 = inlined_call_operand.vmem [shape: f32[32,128], index: 1, kind: input, shape index: {}]
  %s2 = inlined_call_operand.vmem [shape: f32[1,128], index: 2, kind: input, shape index: {}]
  %s3 = inlined_call_operand.vmem [shape: f32[128,32], index: 3, kind: input, shape index: {}]
  %s4 = inlined_call_operand.vmem [shape: f32[1,32], index: 4, kind: input, shape index: {}]
  %s5 = inlined_call_operand.hbm [shape: f32[16,32], index: 5, kind: output, shape index: {}]
  %s6 = sld [smem:[#allocation0]]
  $region30: #{tpu_custom_call.1} parent=0
    _
  %s8 = ssub.s32 1, %s6
  %s9 = scalar_select 0, %s8, %s6
  $region1: #{tpu_custom_call.1} parent=0
    #allocation2 [shape = 'u8[8192]{0}', space=vmem, size = 0x2000, scoped, tag = 'output window, operand 0, single buffered']
    #allocation3 [shape = 's32[1]{0}', space=sflag, size = 0x4, scoped, tag = 'scoped memory for tpu_custom_call.1']
    %10 = vsyncpa [#allocation3], 0
    // Predicated region
    $region2: #{tpu_custom_call.1} parent=1 // pred_check
      _
    $region3: #{tpu_custom_call.1} parent=1 // pred_check_branch
      %12 = sbr.rel (0) target = $region5
    $region4: #{tpu_custom_call.1} parent=1 // pred_region
      _
    $region5: #{tpu_custom_call.1} parent=1 // pred_fallthru
      _
    // Predicated region
    $region6: #{tpu_custom_call.1} parent=1 // pred_check
      _
    $region7: #{tpu_custom_call.1} parent=1 // pred_check_branch
      %14 = sbr.rel (0) target = $region9
    $region8: #{tpu_custom_call.1} parent=1 // pred_region
      _
    $region9: #{tpu_custom_call.1} parent=1 // pred_fallthru
      _
    // Predicated region
    $region10: #{tpu_custom_call.1} parent=1 // pred_check
      _
    $region11: #{tpu_custom_call.1} parent=1 // pred_check_branch
      %16 = sbr.rel (0) target = $region13
    $region12: #{tpu_custom_call.1} parent=1 // pred_region
      _
    $region13: #{tpu_custom_call.1} parent=1 // pred_fallthru
      _
    // Predicated region
    $region14: #{tpu_custom_call.1} parent=1 // pred_check
      _
    $region15: #{tpu_custom_call.1} parent=1 // pred_check_branch
      %18 = sbr.rel (0) target = $region17
    $region16: #{tpu_custom_call.1} parent=1 // pred_region
      _
    $region17: #{tpu_custom_call.1} parent=1 // pred_fallthru
      _
    // Predicated region
    $region18: #{tpu_custom_call.1} parent=1 // pred_check
      _
    $region19: #{tpu_custom_call.1} parent=1 // pred_check_branch
      %20 = sbr.rel (0) target = $region21
    $region20: #{tpu_custom_call.1} parent=1 // pred_region
      _
    $region21: #{tpu_custom_call.1} parent=1 // pred_fallthru
      _
    %v21 = vld [vmem:[%s0] sm:$0xff]
    %v22 = vld [vmem:[%s0 + $0x8] sm:$0xff]
    %v23 = vld [vmem:[%s1] sm:$0xff]
    %v24 = vld [vmem:[%s1 + $0x8] sm:$0xff]
    %v25 = vld [vmem:[%s1 + $0x10] sm:$0xff]
    %v26 = vld [vmem:[%s1 + $0x18] sm:$0xff]
    %v27 = vld [vmem:[%s2] sm:$0x1]
    %v29 = vlaneseq
    %v30 = vshrl.u32 %v29, 7
    %v31 = vsub.s32 0, %v30
    %v32 = vrot.slane %v27, %v31
    %vm34 = vcmask 261120
    %v36 = vsel %vm34, %v21, 0
    %v39 = vsel %vm34, %v22, 0
    %41 = vmatprep.subr.mxu0 0.0
    %42 = vmatpush1.msra.mxu0 %v23
    %43 = vmatprep.subr.mxu0 0.0
    %44 = vmatpush1.msra.mxu0 %v24
    %45 = vmatprep.subr.mxu0 0.0
    %46 = vmatpush1.msra.mxu0 %v25
    %47 = vmatprep.subr.mxu0 0.0
    %48 = vmatpush1.msra.mxu0 %v26
    %49 = vmatprep.subr.mxu0 0.0
    %50 = vmatpush1.msra.mxu0 0.0
    %51 = vmatprep.subr.mxu0 0.0
    %52 = vmatpush1.msra.mxu0 0.0
    %53 = vmatprep.subr.mxu0 0.0
    %54 = vmatpush1.msra.mxu0 0.0
    %55 = vmatprep.subr.mxu0 0.0
    %56 = vmatpush1.msra.mxu0 0.0
    %57 = vmatprep.subr.mxu0 0.0
    %58 = vmatpush1.msra.mxu0 0.0
    %59 = vmatprep.subr.mxu0 0.0
    %60 = vmatpush1.msra.mxu0 0.0
    %61 = vmatprep.subr.mxu0 0.0
    %62 = vmatpush1.msra.mxu0 0.0
    %63 = vmatprep.subr.mxu0 0.0
    %64 = vmatpush1.msra.mxu0 0.0
    %65 = vmatprep.subr.mxu0 0.0
    %66 = vmatpush1.msra.mxu0 0.0
    %67 = vmatprep.subr.mxu0 0.0
    %68 = vmatpush1.msra.mxu0 0.0
    %69 = vmatprep.subr.mxu0 0.0
    %70 = vmatpush1.msra.mxu0 0.0
    %71 = vmatprep.subr.mxu0 0.0
    %72 = vmatpush1.msra.mxu0 0.0
    %73 = vmatprep.subr.mxu0 0.0
    %74 = vmatpush1.msra.mxu0 0.0
    %75 = vmatprep.subr.mxu0 0.0
    %76 = vmatpush1.msra.mxu0 0.0
    %77 = vmatprep.subr.mxu0 0.0
    %78 = vmatpush1.msra.mxu0 0.0
    %79 = vmatprep.subr.mxu0 0.0
    %80 = vmatpush1.msra.mxu0 0.0
    %81 = vmatprep.subr.mxu0 0.0
    %82 = vmatpush1.msra.mxu0 0.0
    %83 = vmatprep.subr.mxu0 0.0
    %84 = vmatpush1.msra.mxu0 0.0
    %85 = vmatprep.subr.mxu0 0.0
    %86 = vmatpush1.msra.mxu0 0.0
    %87 = vmatprep.subr.mxu0 0.0
    %88 = vmatpush1.msra.mxu0 0.0
    %89 = vmatprep.subr.mxu0 0.0
    %90 = vmatpush1.msra.mxu0 0.0
    %91 = vmatprep.subr.mxu0 0.0
    %92 = vmatpush1.msra.mxu0 0.0
    %93 = vmatprep.subr.mxu0 0.0
    %94 = vmatpush1.msra.mxu0 0.0
    %95 = vmatprep.subr.mxu0 0.0
    %96 = vmatpush1.msra.mxu0 0.0
    %97 = vmatprep.subr.mxu0 0.0
    %98 = vmatpush1.msra.mxu0 0.0
    %99 = vmatprep.subr.mxu0 0.0
    %100 = vmatpush1.msra.mxu0 0.0
    %101 = vmatprep.subr.mxu0 0.0
    %102 = vmatpush1.msra.mxu0 0.0
    %103 = vmatprep.subr.mxu0 0.0
    %104 = vmatpush1.msra.mxu0 0.0
    %105 = vmatprep.mubr.f32.mxu0 0.0
    %106 = vmatmul.mubr.f32.gmra.mrb[0].mxu0 %v36
    %v107 = vpop.f32.mrb[0].mxu0
    %v108 = vadd.f32 %v32, %v107
    %v109 = vpop.f32.mrb[0].mxu0
    %110 = vmatprep.mubr.f32.mxu0 0.0
    %111 = vmatmul.mubr.f32.gmra.mrb[0].mxu0 %v39
    %v112 = vpop.f32.mrb[0].mxu0
    %v113 = vadd.f32 %v32, %v112
    %v114 = vpop.f32.mrb[0].mxu0
    %115 = vdwg.mxu0
    %v116 = vmul.f32 %v108, 0.5
    %v117 = vmul.f32 %v113, 0.5
    %v118 = vmul.f32 %v108, 0.70710677
    %v119 = vmul.f32 %v113, 0.70710677
    %v120 = verf.f32.pop %v118
    %v121 = verf.f32.pop %v119
    %v122 = vadd.f32 %v120, 1.0
    %v123 = vadd.f32 %v121, 1.0
    %v124 = vmul.f32 %v116, %v122
    %v125 = vmul.f32 %v117, %v123
    %v126 = vld [vmem:[%s3] sm:$0xff]
    %v127 = vld [vmem:[%s3 + $0x8] sm:$0xff]
    %v128 = vld [vmem:[%s3 + $0x10] sm:$0xff]
    %v129 = vld [vmem:[%s3 + $0x18] sm:$0xff]
    %v130 = vld [vmem:[%s3 + $0x20] sm:$0xff]
    %v131 = vld [vmem:[%s3 + $0x28] sm:$0xff]
    %v132 = vld [vmem:[%s3 + $0x30] sm:$0xff]
    %v133 = vld [vmem:[%s3 + $0x38] sm:$0xff]
    %v134 = vld [vmem:[%s3 + $0x40] sm:$0xff]
    %v135 = vld [vmem:[%s3 + $0x48] sm:$0xff]
    %v136 = vld [vmem:[%s3 + $0x50] sm:$0xff]
    %v137 = vld [vmem:[%s3 + $0x58] sm:$0xff]
    %v138 = vld [vmem:[%s3 + $0x60] sm:$0xff]
    %v139 = vld [vmem:[%s3 + $0x68] sm:$0xff]
    %v140 = vld [vmem:[%s3 + $0x70] sm:$0xff]
    %v141 = vld [vmem:[%s3 + $0x78] sm:$0xff]
    %v142 = vld [vmem:[%s4] sm:$0x1]
    %v144 = vlaneseq
    %v145 = vshrl.u32 %v144, 7
    %v146 = vsub.s32 0, %v145
    %v147 = vrot.slane %v142, %v146
    %149 = vmatprep.subr.mxu0 0.0
    %150 = vmatpush1.msra.mxu0 %v126
    %151 = vmatprep.subr.mxu0 0.0
    %152 = vmatpush1.msra.mxu0 %v127
    %153 = vmatprep.subr.mxu0 0.0
    %154 = vmatpush1.msra.mxu0 %v128
    %155 = vmatprep.subr.mxu0 0.0
    %156 = vmatpush1.msra.mxu0 %v129
    %157 = vmatprep.subr.mxu0 0.0
    %158 = vmatpush1.msra.mxu0 %v130
    %159 = vmatprep.subr.mxu0 0.0
    %160 = vmatpush1.msra.mxu0 %v131
    %161 = vmatprep.subr.mxu0 0.0
    %162 = vmatpush1.msra.mxu0 %v132
    %163 = vmatprep.subr.mxu0 0.0
    %164 = vmatpush1.msra.mxu0 %v133
    %165 = vmatprep.subr.mxu0 0.0
    %166 = vmatpush1.msra.mxu0 %v134
    %167 = vmatprep.subr.mxu0 0.0
    %168 = vmatpush1.msra.mxu0 %v135
    %169 = vmatprep.subr.mxu0 0.0
    %170 = vmatpush1.msra.mxu0 %v136
    %171 = vmatprep.subr.mxu0 0.0
    %172 = vmatpush1.msra.mxu0 %v137
    %173 = vmatprep.subr.mxu0 0.0
    %174 = vmatpush1.msra.mxu0 %v138
    %175 = vmatprep.subr.mxu0 0.0
    %176 = vmatpush1.msra.mxu0 %v139
    %177 = vmatprep.subr.mxu0 0.0
    %178 = vmatpush1.msra.mxu0 %v140
    %179 = vmatprep.subr.mxu0 0.0
    %180 = vmatpush1.msra.mxu0 %v141
    %181 = vmatprep.subr.mxu0 0.0
    %182 = vmatpush1.msra.mxu0 0.0
    %183 = vmatprep.subr.mxu0 0.0
    %184 = vmatpush1.msra.mxu0 0.0
    %185 = vmatprep.subr.mxu0 0.0
    %186 = vmatpush1.msra.mxu0 0.0
    %187 = vmatprep.subr.mxu0 0.0
    %188 = vmatpush1.msra.mxu0 0.0
    %189 = vmatprep.subr.mxu0 0.0
    %190 = vmatpush1.msra.mxu0 0.0
    %191 = vmatprep.subr.mxu0 0.0
    %192 = vmatpush1.msra.mxu0 0.0
    %193 = vmatprep.subr.mxu0 0.0
    %194 = vmatpush1.msra.mxu0 0.0
    %195 = vmatprep.subr.mxu0 0.0
    %196 = vmatpush1.msra.mxu0 0.0
    %197 = vmatprep.subr.mxu0 0.0
    %198 = vmatpush1.msra.mxu0 0.0
    %199 = vmatprep.subr.mxu0 0.0
    %200 = vmatpush1.msra.mxu0 0.0
    %201 = vmatprep.subr.mxu0 0.0
    %202 = vmatpush1.msra.mxu0 0.0
    %203 = vmatprep.subr.mxu0 0.0
    %204 = vmatpush1.msra.mxu0 0.0
    %205 = vmatprep.subr.mxu0 0.0
    %206 = vmatpush1.msra.mxu0 0.0
    %207 = vmatprep.subr.mxu0 0.0
    %208 = vmatpush1.msra.mxu0 0.0
    %209 = vmatprep.subr.mxu0 0.0
    %210 = vmatpush1.msra.mxu0 0.0
    %211 = vmatprep.subr.mxu0 0.0
    %212 = vmatpush1.msra.mxu0 0.0
    %213 = vmatprep.mubr.f32.mxu0 0.0
    %214 = vmatmul.mubr.f32.gmra.mrb[0].mxu0 %v124
    %v215 = vpop.f32.mrb[0].mxu0
    %v216 = vadd.f32 %v147, %v215
    %v217 = vpop.f32.mrb[0].mxu0
    %218 = vmatprep.mubr.f32.mxu0 0.0
    %219 = vmatmul.mubr.f32.gmra.mrb[0].mxu0 %v125
    %v220 = vpop.f32.mrb[0].mxu0
    %v221 = vadd.f32 %v147, %v220
    %v222 = vpop.f32.mrb[0].mxu0
    %223 = vdwg.mxu0
    %224 = vst.msk [vmem:[#allocation2] sm:$0xff] %vm34, %v216
    %225 = vst.msk [vmem:[#allocation2 + $0x8] sm:$0xff] %vm34, %v221
    // Predicated region
    $region22: #{tpu_custom_call.1} parent=1 // pred_check
      _
    $region23: #{tpu_custom_call.1} parent=1 // pred_check_branch
      %227 = sbr.rel (0) target = $region25
    $region24: #{tpu_custom_call.1} parent=1 // pred_region
      %s229 = ssub.s32 256, 256
      %230 = vsyncadd [#allocation3], %s229
      %s231 = sshll.u32 [#allocation2], 4
      %s232 = int_to_ptr.vmem [resolvable:$true] %s231
      %237 = dma.vmem_to_hbm [thread:$0]  %s232, 256, %s5, [#allocation3], 128, 128, 8
    $region25: #{tpu_custom_call.1} parent=1 // pred_fallthru
      _
    // Predicated region
    $region26: #{tpu_custom_call.1} parent=1 // pred_check
      _
    $region27: #{tpu_custom_call.1} parent=1 // pred_check_branch
      %239 = sbr.rel (0) target = $region29
    $region28: #{tpu_custom_call.1} parent=1 // pred_region
      %240 = dma.done [#allocation3], 256
    $region29: #{tpu_custom_call.1} parent=1 // pred_fallthru
      _
    %241 = vsyncpa [#allocation3], 1

</llo_original>
